<compile_context>
chip_gen: v5e
topology: v5e:2x2
jax: 0.10.0
libtpu: 0.0.40
codegen_flags: <defaults>
</compile_context>

<pallas_src>
import functools

import jax
import jax.numpy as jnp
from jax.experimental import pallas as pl
from jax.experimental.pallas import tpu as pltpu

LANE = 128
SUBLANE = 8
DEFAULT_TILE_B = 512  # >= 512 rows per step amortizes the ~0.35 us/step overhead


def _round_up(n, m):
    return ((n + m - 1) // m) * m


# ----------------------------------------------------------------------------
# Kernel: one fused 3-layer MLP over a (TILE_B, obs) tile of the batch.
# ----------------------------------------------------------------------------
def _mlp_kernel(x_ref, w1_ref, b1_ref, w2_ref, b2_ref, w3_ref, b3_ref, o_ref):
    cdt = w1_ref.dtype  # compute dtype for MXU operands (f32 or bf16)

    # Layer 1: (T, obs) @ (obs, hid) -> f32 acc, f32 bias-add + tanh.
    h1 = jnp.tanh(
        jnp.dot(x_ref[...], w1_ref[...], preferred_element_type=jnp.float32)
        + b1_ref[...]
    ).astype(cdt)
    # Layer 2: (T, hid) @ (hid, hid)
    h2 = jnp.tanh(
        jnp.dot(h1, w2_ref[...], preferred_element_type=jnp.float32) + b2_ref[...]
    ).astype(cdt)
    # Layer 3: (T, hid) @ (hid, act_pad) -> lane-dense (128-wide) output slab.
    o_ref[...] = jnp.tanh(
        jnp.dot(h2, w3_ref[...], preferred_element_type=jnp.float32) + b3_ref[...]
    ).astype(o_ref.dtype)


# ----------------------------------------------------------------------------
# One-time parameter preparation (hoisted out of the per-call path):
#   PyTorch layout W:(out, in), b:(out,)  ->  W:(in, out), b:(1, out),
#   last layer padded to a 128-wide lane-dense output.
# ----------------------------------------------------------------------------
def prepare_params(params, compute_dtype=jnp.float32):
    w1, b1 = params["fc1"]
    w2, b2 = params["fc2"]
    w3, b3 = params["fc3"]
    act_size = w3.shape[0]
    hid = w3.shape[1]
    act_pad = _round_up(act_size, LANE)

    w3t = jnp.zeros((hid, act_pad), compute_dtype)
    w3t = w3t.at[:, :act_size].set(w3.T.astype(compute_dtype))
    b3p = jnp.zeros((1, act_pad), jnp.float32)
    b3p = b3p.at[:, :act_size].set(b3.astype(jnp.float32))

    return {
        "w1": w1.T.astype(compute_dtype),
        "b1": b1.reshape(1, -1).astype(jnp.float32),  # biases stay f32 (VPU path)
        "w2": w2.T.astype(compute_dtype),
        "b2": b2.reshape(1, -1).astype(jnp.float32),
        "w3": w3t,
        "b3": b3p,
        "act_size": act_size,
        "act_pad": act_pad,
        "compute_dtype": compute_dtype,
    }


# ----------------------------------------------------------------------------
# Forward pass wrapper.
# ----------------------------------------------------------------------------
@functools.partial(jax.jit, static_argnames=("tile_b",))
def _net_forward_impl(xk, w1, b1, w2, b2, w3, b3, *, tile_b):
    padded_batch, obs = xk.shape
    hid = w1.shape[1]
    act_pad = w3.shape[1]

    def const(shape):  # weights/biases: same block every grid step -> resident
        return pl.BlockSpec(shape, lambda i: (0, 0))

    return pl.pallas_call(
        _mlp_kernel,
        out_shape=jax.ShapeDtypeStruct((padded_batch, act_pad), jnp.float32),
        grid=(padded_batch // tile_b,),
        in_specs=[
            pl.BlockSpec((tile_b, obs), lambda i: (i, 0)),  # streamed batch tile
            const((obs, hid)), const((1, hid)),
            const((hid, hid)), const((1, hid)),
            const((hid, act_pad)), const((1, act_pad)),
        ],
        out_specs=pl.BlockSpec((tile_b, act_pad), lambda i: (i, 0)),
        compiler_params=pltpu.CompilerParams(
            dimension_semantics=("parallel",),  # megacore sharding on v7x
        ),
    )(xk, w1, b1, w2, b2, w3, b3)


def net_forward(x, prepped, tile_b=DEFAULT_TILE_B):
    """x: (batch, obs_size) f32.  prepped: output of prepare_params().
    Returns (batch, act_size) f32, matching the PyTorch forward."""
    batch = x.shape[0]

    # Batch tile: big enough to amortize per-step overhead, but no bigger than
    # the (sublane-rounded) batch so tiny RL-style batches don't over-pad.
    tile = min(tile_b, _round_up(batch, SUBLANE))
    padded_batch = _round_up(batch, tile)

    xk = x.astype(prepped["compute_dtype"])
    if padded_batch != batch:
        xk = jnp.pad(xk, ((0, padded_batch - batch), (0, 0)))

    out_padded = _net_forward_impl(
        xk,
        prepped["w1"], prepped["b1"],
        prepped["w2"], prepped["b2"],
        prepped["w3"], prepped["b3"],
        tile_b=tile,
    )
    return out_padded[:batch, : prepped["act_size"]]


# ----------------------------------------------------------------------------
# Init + pure-JAX reference (PyTorch nn.Linear semantics).
# ----------------------------------------------------------------------------
def init_params(key, obs_size, act_size, hid_size=64):
    """Deterministic init matching nn.Linear's default U(-1/sqrt(fan_in), +)."""
    def linear(k, fan_in, fan_out):
        kw, kb = jax.random.split(k)
        bound = 1.0 / jnp.sqrt(fan_in)
        w = jax.random.uniform(kw, (fan_out, fan_in), jnp.float32, -bound, bound)
        b = jax.random.uniform(kb, (fan_out,), jnp.float32, -bound, bound)
        return w, b

    k1, k2, k3 = jax.random.split(key, 3)
    return {
        "fc1": linear(k1, obs_size, hid_size),
        "fc2": linear(k2, hid_size, hid_size),
        "fc3": linear(k3, hid_size, act_size),
    }


def net_forward_ref(x, params):
    h = x
    for name in ("fc1", "fc2", "fc3"):
        w, b = params[name]
        h = jnp.tanh(h @ w.T + b)
    return h


if __name__ == "__main__":
    key = jax.random.PRNGKey(0)
    k_param, k_x, k_xb = jax.random.split(key, 3)

    batch, obs_size, act_size, hid_size = 2, 8, 4, 64
    params = init_params(k_param, obs_size, act_size, hid_size)
    x = jax.random.normal(k_x, (batch, obs_size), dtype=jnp.float32)

    # --- f32 path, tiny batch (strict check vs. reference) ---
    prepped_f32 = prepare_params(params, compute_dtype=jnp.float32)
    out = net_forward(x, prepped_f32)
    jax.block_until_ready(out)
    ref = net_forward_ref(x, params)
    assert out.shape == (batch, act_size)
    assert jnp.allclose(out, ref, atol=1e-5, rtol=1e-5)

    # --- f32 path, larger batch (exercises the multi-tile grid + padding) ---
    big_batch = 1000
    xb = jax.random.normal(k_xb, (big_batch, obs_size), dtype=jnp.float32)
    out_big = net_forward(xb, prepped_f32)
    jax.block_until_ready(out_big)
    ref_big = net_forward_ref(xb, params)
    assert out_big.shape == (big_batch, act_size)
    assert jnp.allclose(out_big, ref_big, atol=1e-5, rtol=1e-5)

    # --- bf16 bandwidth path (v6e/v7x), relaxed tolerance ---
    prepped_bf16 = prepare_params(params, compute_dtype=jnp.bfloat16)
    out_bf16 = net_forward(xb, prepped_bf16)
    jax.block_until_ready(out_bf16)
    assert out_bf16.shape == (big_batch, act_size)
    assert jnp.allclose(out_bf16.astype(jnp.float32), ref_big, atol=5e-2)

    print("KERNEL_OK")
</pallas_src>

<mosaic_0001>
module attributes {stable_mosaic.version = 11 : i64} {
  func.func @_mlp_kernel(%arg0: i32, %arg1: memref<8x8xf32, #tpu.memory_space<vmem>>, %arg2: memref<8x64xf32, #tpu.memory_space<vmem>>, %arg3: memref<1x64xf32, #tpu.memory_space<vmem>>, %arg4: memref<64x64xf32, #tpu.memory_space<vmem>>, %arg5: memref<1x64xf32, #tpu.memory_space<vmem>>, %arg6: memref<64x128xf32, #tpu.memory_space<vmem>>, %arg7: memref<1x128xf32, #tpu.memory_space<vmem>>, %arg8: memref<8x128xf32, #tpu.memory_space<vmem>>) attributes {dimension_semantics = [#tpu.dimension_semantics<parallel>], iteration_bounds = array<i64: 1>, scalar_prefetch = 0 : i64, scratch_operands = 0 : i64, tpu.core_type = #tpu.core_type<tc>, window_params = [{transform_indices = @transform_0, window_bounds = array<i64: 8, 8>}, {pipeline_mode = #tpu.pipeline_mode<synchronous>, transform_indices = @transform_1, window_bounds = array<i64: 8, 64>}, {pipeline_mode = #tpu.pipeline_mode<synchronous>, transform_indices = @transform_2, window_bounds = array<i64: 1, 64>}, {pipeline_mode = #tpu.pipeline_mode<synchronous>, transform_indices = @transform_3, window_bounds = array<i64: 64, 64>}, {pipeline_mode = #tpu.pipeline_mode<synchronous>, transform_indices = @transform_4, window_bounds = array<i64: 1, 64>}, {pipeline_mode = #tpu.pipeline_mode<synchronous>, transform_indices = @transform_5, window_bounds = array<i64: 64, 128>}, {pipeline_mode = #tpu.pipeline_mode<synchronous>, transform_indices = @transform_6, window_bounds = array<i64: 1, 128>}, {transform_indices = @transform_7, window_bounds = array<i64: 8, 128>}]} {
    %c0 = arith.constant 0 : index
    %c0_0 = arith.constant 0 : index
    %0 = vector.load %arg1[%c0, %c0_0] : memref<8x8xf32, #tpu.memory_space<vmem>>, vector<8x8xf32>
    %c0_1 = arith.constant 0 : index
    %c0_2 = arith.constant 0 : index
    %1 = vector.load %arg2[%c0_1, %c0_2] : memref<8x64xf32, #tpu.memory_space<vmem>>, vector<8x64xf32>
    %cst = arith.constant dense<0.000000e+00> : vector<8x64xf32>
    %2 = tpu.matmul %0, %1, %cst {dimension_numbers = #tpu.dot_dimension_numbers<[1], [0], [0], [1], [0, 0, 1, 1], [], []>} : vector<8x8xf32>, vector<8x64xf32>, vector<8x64xf32> -> vector<8x64xf32>
    %c0_3 = arith.constant 0 : index
    %c0_4 = arith.constant 0 : index
    %3 = vector.load %arg3[%c0_3, %c0_4] : memref<1x64xf32, #tpu.memory_space<vmem>>, vector<1x64xf32>
    %4 = vector.broadcast %3 : vector<1x64xf32> to vector<8x64xf32>
    %5 = arith.addf %2, %4 : vector<8x64xf32>
    %6 = math.tanh %5 : vector<8x64xf32>
    %c0_5 = arith.constant 0 : index
    %c0_6 = arith.constant 0 : index
    %7 = vector.load %arg4[%c0_5, %c0_6] : memref<64x64xf32, #tpu.memory_space<vmem>>, vector<64x64xf32>
    %cst_7 = arith.constant dense<0.000000e+00> : vector<8x64xf32>
    %8 = tpu.matmul %6, %7, %cst_7 {dimension_numbers = #tpu.dot_dimension_numbers<[1], [0], [0], [1], [0, 0, 1, 1], [], []>} : vector<8x64xf32>, vector<64x64xf32>, vector<8x64xf32> -> vector<8x64xf32>
    %c0_8 = arith.constant 0 : index
    %c0_9 = arith.constant 0 : index
    %9 = vector.load %arg5[%c0_8, %c0_9] : memref<1x64xf32, #tpu.memory_space<vmem>>, vector<1x64xf32>
    %10 = vector.broadcast %9 : vector<1x64xf32> to vector<8x64xf32>
    %11 = arith.addf %8, %10 : vector<8x64xf32>
    %12 = math.tanh %11 : vector<8x64xf32>
    %c0_10 = arith.constant 0 : index
    %c0_11 = arith.constant 0 : index
    %13 = vector.load %arg6[%c0_10, %c0_11] : memref<64x128xf32, #tpu.memory_space<vmem>>, vector<64x128xf32>
    %cst_12 = arith.constant dense<0.000000e+00> : vector<8x128xf32>
    %14 = tpu.matmul %12, %13, %cst_12 {dimension_numbers = #tpu.dot_dimension_numbers<[1], [0], [0], [1], [0, 0, 1, 1], [], []>} : vector<8x64xf32>, vector<64x128xf32>, vector<8x128xf32> -> vector<8x128xf32>
    %c0_13 = arith.constant 0 : index
    %c0_14 = arith.constant 0 : index
    %15 = vector.load %arg7[%c0_13, %c0_14] : memref<1x128xf32, #tpu.memory_space<vmem>>, vector<1x128xf32>
    %16 = vector.broadcast %15 : vector<1x128xf32> to vector<8x128xf32>
    %17 = arith.addf %14, %16 : vector<8x128xf32>
    %18 = math.tanh %17 : vector<8x128xf32>
    %c0_15 = arith.constant 0 : index
    %c0_16 = arith.constant 0 : index
    %19 = vector.load %arg8[%c0_15, %c0_16] : memref<8x128xf32, #tpu.memory_space<vmem>>, vector<8x128xf32>
    tpu.vector_store %arg8[%c0_15, %c0_16], %18 {strides = array<i32>} : memref<8x128xf32, #tpu.memory_space<vmem>>, vector<8x128xf32>,
    return
  }
  func.func @transform_0(%arg0: i32) -> (i32, i32) {
    %c0_i32 = arith.constant 0 : i32
    %c0_i32_0 = arith.constant 0 : i32
    return %arg0, %c0_i32 : i32, i32
  }
  func.func @transform_1(%arg0: i32) -> (i32, i32) {
    %c0_i32 = arith.constant 0 : i32
    %c0_i32_0 = arith.constant 0 : i32
    %c0_i32_1 = arith.constant 0 : i32
    return %c0_i32, %c0_i32_0 : i32, i32
  }
  func.func @transform_2(%arg0: i32) -> (i32, i32) {
    %c0_i32 = arith.constant 0 : i32
    %c0_i32_0 = arith.constant 0 : i32
    %c0_i32_1 = arith.constant 0 : i32
    return %c0_i32, %c0_i32_0 : i32, i32
  }
  func.func @transform_3(%arg0: i32) -> (i32, i32) {
    %c0_i32 = arith.constant 0 : i32
    %c0_i32_0 = arith.constant 0 : i32
    %c0_i32_1 = arith.constant 0 : i32
    return %c0_i32, %c0_i32_0 : i32, i32
  }
  func.func @transform_4(%arg0: i32) -> (i32, i32) {
    %c0_i32 = arith.constant 0 : i32
    %c0_i32_0 = arith.constant 0 : i32
    %c0_i32_1 = arith.constant 0 : i32
    return %c0_i32, %c0_i32_0 : i32, i32
  }
  func.func @transform_5(%arg0: i32) -> (i32, i32) {
    %c0_i32 = arith.constant 0 : i32
    %c0_i32_0 = arith.constant 0 : i32
    %c0_i32_1 = arith.constant 0 : i32
    return %c0_i32, %c0_i32_0 : i32, i32
  }
  func.func @transform_6(%arg0: i32) -> (i32, i32) {
    %c0_i32 = arith.constant 0 : i32
    %c0_i32_0 = arith.constant 0 : i32
    %c0_i32_1 = arith.constant 0 : i32
    return %c0_i32, %c0_i32_0 : i32, i32
  }
  func.func @transform_7(%arg0: i32) -> (i32, i32) {
    %c0_i32 = arith.constant 0 : i32
    %c0_i32_0 = arith.constant 0 : i32
    return %arg0, %c0_i32 : i32, i32
  }
}

</mosaic_0001>

<llo_original>
// kernel: _net_forward_impl.1
$region0: #{_net_forward_impl.1}
  #allocation0 [shape = 'u32[]', space=smem, size = 0x4, offset = 0x4, fixed_abs, tag = 'smem constant byte address 0x4 - core index']
  #allocation1 [shape = 'u32[72,128]{1,0:T(1,128)}', space=vmem, size = 0x9000, scoped, tag = 'internal scratch']
  %s0 = inlined_call_operand.hbm [shape: f32[8,8], index: 0, kind: input, shape index: {}]
  %s1 = inlined_call_operand.hbm [shape: f32[8,64], index: 1, kind: input, shape index: {}]
  %s2 = inlined_call_operand.vmem [shape: f32[1,64], index: 2, kind: input, shape index: {}]
  %s3 = inlined_call_operand.hbm [shape: f32[64,64], index: 3, kind: input, shape index: {}]
  %s4 = inlined_call_operand.vmem [shape: f32[1,64], index: 4, kind: input, shape index: {}]
  %s5 = inlined_call_operand.hbm [shape: f32[64,128], index: 5, kind: input, shape index: {}]
  %s6 = inlined_call_operand.vmem [shape: f32[1,128], index: 6, kind: input, shape index: {}]
  %s7 = inlined_call_operand.hbm [shape: f32[8,128], index: 7, kind: output, shape index: {}]
  %s8 = sld [smem:[#allocation0]]
  $region54: #{_net_forward_impl.1} parent=0
    _
  %s10 = ssub.s32 1, %s8
  %s11 = scalar_select 0, %s10, %s8
  $region1: #{_net_forward_impl.1} parent=0
    #allocation2 [shape = 'u8[4096]{0}', space=vmem, size = 0x1000, scoped, tag = 'input window, operand 0, single buffered']
    #allocation3 [shape = 's32[1]{0}', space=sflag, size = 0x4, scoped, tag = 'scoped memory for _net_forward_impl.1']
    #allocation4 [shape = 's32[1]{0}', space=sflag, size = 0x4, scoped, tag = 'scoped memory for _net_forward_impl.1']
    #allocation5 [shape = 'u8[4096]{0}', space=vmem, size = 0x1000, scoped, tag = 'input window, operand 1, single buffered']
    #allocation6 [shape = 's32[1]{0}', space=sflag, size = 0x4, scoped, tag = 'scoped memory for _net_forward_impl.1']
    #allocation7 [shape = 'u8[32768]{0}', space=vmem, size = 0x8000, scoped, tag = 'input window, operand 3, single buffered']
    #allocation8 [shape = 'u8[32768]{0}', space=vmem, size = 0x8000, scoped, tag = 'input window, operand 5, single buffered']
    #allocation9 [shape = 's32[1]{0}', space=sflag, size = 0x4, scoped, tag = 'scoped memory for _net_forward_impl.1']
    #allocation10 [shape = 'u8[4096]{0}', space=vmem, size = 0x1000, scoped, tag = 'output window, operand 0, single buffered']
    %12 = vsyncpa [#allocation3], 0
    %13 = vsyncpa [#allocation6], 0
    %14 = vsyncpa [#allocation9], 0
    %15 = vsyncpa [#allocation4], 0
    // Predicated region
    $region2: #{_net_forward_impl.1} parent=1 // pred_check
      _
    $region3: #{_net_forward_impl.1} parent=1 // pred_check_branch
      %17 = sbr.rel (0) target = $region5
    $region4: #{_net_forward_impl.1} parent=1 // pred_region
      %19 = vsyncadd [#allocation3], 0
      %s21 = sshll.u32 %s0, 4
      %s22 = int_to_ptr.hbm [resolvable:$true] %s21
      %s23 = sshll.u32 [#allocation2], 4
      %s24 = int_to_ptr.vmem [resolvable:$true] %s23
      %26 = dma.hbm_to_vmem [thread:$0]  %s22, 128, %s24, [#allocation3]
    $region5: #{_net_forward_impl.1} parent=1 // pred_fallthru
      _
    // Predicated region
    $region6: #{_net_forward_impl.1} parent=1 // pred_check
      _
    $region7: #{_net_forward_impl.1} parent=1 // pred_check_branch
      %28 = sbr.rel (0) target = $region9
    $region8: #{_net_forward_impl.1} parent=1 // pred_region
      %30 = vsyncadd [#allocation6], 0
      %s32 = sshll.u32 %s1, 4
      %s33 = int_to_ptr.hbm [resolvable:$true] %s32
      %s34 = sshll.u32 [#allocation5], 4
      %s35 = int_to_ptr.vmem [resolvable:$true] %s34
      %37 = dma.hbm_to_vmem [thread:$0]  %s33, 128, %s35, [#allocation6]
    $region9: #{_net_forward_impl.1} parent=1 // pred_fallthru
      _
    // Predicated region
    $region10: #{_net_forward_impl.1} parent=1 // pred_check
      _
    $region11: #{_net_forward_impl.1} parent=1 // pred_check_branch
      %39 = sbr.rel (0) target = $region13
    $region12: #{_net_forward_impl.1} parent=1 // pred_region
      _
    $region13: #{_net_forward_impl.1} parent=1 // pred_fallthru
      _
    // Predicated region
    $region14: #{_net_forward_impl.1} parent=1 // pred_check
      _
    $region15: #{_net_forward_impl.1} parent=1 // pred_check_branch
      %41 = sbr.rel (0) target = $region17
    $region16: #{_net_forward_impl.1} parent=1 // pred_region
      %43 = vsyncadd [#allocation6], 0
      %s44 = sshll.u32 %s3, 4
      %s45 = int_to_ptr.hbm [resolvable:$true] %s44
      %s46 = sshll.u32 [#allocation7], 4
      %s47 = int_to_ptr.vmem [resolvable:$true] %s46
      %52 = dma.hbm_to_vmem [thread:$0]  %s45, 1024, %s47, [#allocation6], 128, 128, 8
    $region17: #{_net_forward_impl.1} parent=1 // pred_fallthru
      _
    // Predicated region
    $region18: #{_net_forward_impl.1} parent=1 // pred_check
      _
    $region19: #{_net_forward_impl.1} parent=1 // pred_check_branch
      %54 = sbr.rel (0) target = $region21
    $region20: #{_net_forward_impl.1} parent=1 // pred_region
      _
    $region21: #{_net_forward_impl.1} parent=1 // pred_fallthru
      _
    // Predicated region
    $region22: #{_net_forward_impl.1} parent=1 // pred_check
      _
    $region23: #{_net_forward_impl.1} parent=1 // pred_check_branch
      %56 = sbr.rel (0) target = $region25
    $region24: #{_net_forward_impl.1} parent=1 // pred_region
      %58 = vsyncadd [#allocation9], 0
      %s59 = sshll.u32 %s5, 4
      %s60 = int_to_ptr.hbm [resolvable:$true] %s59
      %s61 = sshll.u32 [#allocation8], 4
      %s62 = int_to_ptr.vmem [resolvable:$true] %s61
      %67 = dma.hbm_to_vmem [thread:$0]  %s60, 1024, %s62, [#allocation9], 128, 128, 8
    $region25: #{_net_forward_impl.1} parent=1 // pred_fallthru
      _
    // Predicated region
    $region26: #{_net_forward_impl.1} parent=1 // pred_check
      _
    $region27: #{_net_forward_impl.1} parent=1 // pred_check_branch
      %69 = sbr.rel (0) target = $region29
    $region28: #{_net_forward_impl.1} parent=1 // pred_region
      _
    $region29: #{_net_forward_impl.1} parent=1 // pred_fallthru
      _
    // Predicated region
    $region30: #{_net_forward_impl.1} parent=1 // pred_check
      _
    $region31: #{_net_forward_impl.1} parent=1 // pred_check_branch
      %71 = sbr.rel (0) target = $region33
    $region32: #{_net_forward_impl.1} parent=1 // pred_region
      %73 = dma.done [#allocation3], 128
    $region33: #{_net_forward_impl.1} parent=1 // pred_fallthru
      _
    // Predicated region
    $region34: #{_net_forward_impl.1} parent=1 // pred_check
      _
    $region35: #{_net_forward_impl.1} parent=1 // pred_check_branch
      %75 = sbr.rel (0) target = $region37
    $region36: #{_net_forward_impl.1} parent=1 // pred_region
      %77 = dma.done [#allocation6], 128
    $region37: #{_net_forward_impl.1} parent=1 // pred_fallthru
      _
    // Predicated region
    $region38: #{_net_forward_impl.1} parent=1 // pred_check
      _
    $region39: #{_net_forward_impl.1} parent=1 // pred_check_branch
      %79 = sbr.rel (0) target = $region41
    $region40: #{_net_forward_impl.1} parent=1 // pred_region
      %81 = dma.done [#allocation6], 1024
    $region41: #{_net_forward_impl.1} parent=1 // pred_fallthru
      _
    // Predicated region
    $region42: #{_net_forward_impl.1} parent=1 // pred_check
      _
    $region43: #{_net_forward_impl.1} parent=1 // pred_check_branch
      %83 = sbr.rel (0) target = $region45
    $region44: #{_net_forward_impl.1} parent=1 // pred_region
      %85 = dma.done [#allocation9], 1024
    $region45: #{_net_forward_impl.1} parent=1 // pred_fallthru
      _
    %v86 = vld [vmem:[#allocation2] sm:$0xff]
    %v87 = vld [vmem:[#allocation5] sm:$0xff]
    %v88 = vld [vmem:[%s2] sm:$0x1]
    %v90 = vperm.slane %v88, 0
    %vm92 = vcmask 64512
    %v94 = vsel %vm92, %v86, 0
    %96 = vmatpush.msra.mxu0 0.0
    %97 = vmatpush.msra.mxu0 0.0
    %98 = vmatpush.msra.mxu0 0.0
    %99 = vmatpush.msra.mxu0 0.0
    %100 = vmatpush.msra.mxu0 0.0
    %101 = vmatpush.msra.mxu0 0.0
    %102 = vmatpush.msra.mxu0 0.0
    %103 = vmatpush.msra.mxu0 0.0
    %104 = vmatpush.msra.mxu0 0.0
    %105 = vmatpush.msra.mxu0 0.0
    %106 = vmatpush.msra.mxu0 0.0
    %107 = vmatpush.msra.mxu0 0.0
    %108 = vmatpush.msra.mxu0 0.0
    %109 = vmatpush.msra.mxu0 0.0
    %110 = vmatpush.msra.mxu0 0.0
    %111 = vmatpush.msra.mxu0 %v87
    %112 = vmatmul.f32.gmra.mxu0 %v94
    %v113 = vpop.f32.mrf.mxu0
    %v114 = vadd.f32 %v90, %v113
    %115 = vdwg.mxu0
    %v116 = vtanh.pop %v114
    %v117 = vld [vmem:[#allocation7] sm:$0xff]
    %v118 = vld [vmem:[#allocation7 + $0x8] sm:$0xff]
    %v119 = vld [vmem:[#allocation7 + $0x10] sm:$0xff]
    %v120 = vld [vmem:[#allocation7 + $0x18] sm:$0xff]
    %v121 = vld [vmem:[#allocation7 + $0x20] sm:$0xff]
    %v122 = vld [vmem:[#allocation7 + $0x28] sm:$0xff]
    %v123 = vld [vmem:[#allocation7 + $0x30] sm:$0xff]
    %v124 = vld [vmem:[#allocation7 + $0x38] sm:$0xff]
    %v125 = vld [vmem:[%s4] sm:$0x1]
    %v127 = vperm.slane %v125, 0
    %vm129 = vcmask 523264
    %v131 = vsel %vm129, %v116, 0
    %133 = vmatpush.msra.mxu0 0.0
    %134 = vmatpush.msra.mxu0 0.0
    %135 = vmatpush.msra.mxu0 0.0
    %136 = vmatpush.msra.mxu0 0.0
    %137 = vmatpush.msra.mxu0 0.0
    %138 = vmatpush.msra.mxu0 0.0
    %139 = vmatpush.msra.mxu0 0.0
    %140 = vmatpush.msra.mxu0 0.0
    %141 = vmatpush.msra.mxu0 %v124
    %142 = vmatpush.msra.mxu0 %v123
    %143 = vmatpush.msra.mxu0 %v122
    %144 = vmatpush.msra.mxu0 %v121
    %145 = vmatpush.msra.mxu0 %v120
    %146 = vmatpush.msra.mxu0 %v119
    %147 = vmatpush.msra.mxu0 %v118
    %148 = vmatpush.msra.mxu0 %v117
    %149 = vmatmul.f32.gmra.mxu0 %v131
    %v150 = vpop.f32.mrf.mxu0
    %v151 = vadd.f32 %v127, %v150
    %152 = vdwg.mxu0
    %v153 = vtanh.pop %v151
    %v154 = vld [vmem:[#allocation8] sm:$0xff]
    %v155 = vld [vmem:[#allocation8 + $0x8] sm:$0xff]
    %v156 = vld [vmem:[#allocation8 + $0x10] sm:$0xff]
    %v157 = vld [vmem:[#allocation8 + $0x18] sm:$0xff]
    %v158 = vld [vmem:[#allocation8 + $0x20] sm:$0xff]
    %v159 = vld [vmem:[#allocation8 + $0x28] sm:$0xff]
    %v160 = vld [vmem:[#allocation8 + $0x30] sm:$0xff]
    %v161 = vld [vmem:[#allocation8 + $0x38] sm:$0xff]
    %v162 = vld [vmem:[%s6] sm:$0x1]
    %v164 = vperm.slane %v162, 0
    %v167 = vsel %vm129, %v153, 0
    %169 = vmatpush.msra.mxu0 0.0
    %170 = vmatpush.msra.mxu0 0.0
    %171 = vmatpush.msra.mxu0 0.0
    %172 = vmatpush.msra.mxu0 0.0
    %173 = vmatpush.msra.mxu0 0.0
    %174 = vmatpush.msra.mxu0 0.0
    %175 = vmatpush.msra.mxu0 0.0
    %176 = vmatpush.msra.mxu0 0.0
    %177 = vmatpush.msra.mxu0 %v161
    %178 = vmatpush.msra.mxu0 %v160
    %179 = vmatpush.msra.mxu0 %v159
    %180 = vmatpush.msra.mxu0 %v158
    %181 = vmatpush.msra.mxu0 %v157
    %182 = vmatpush.msra.mxu0 %v156
    %183 = vmatpush.msra.mxu0 %v155
    %184 = vmatpush.msra.mxu0 %v154
    %185 = vmatmul.f32.gmra.mxu0 %v167
    %v186 = vpop.f32.mrf.mxu0
    %v187 = vadd.f32 %v164, %v186
    %188 = vdwg.mxu0
    %v189 = vtanh.pop %v187
    %190 = vst [vmem:[#allocation10] sm:$0xff] %v189
    // Predicated region
    $region46: #{_net_forward_impl.1} parent=1 // pred_check
      _
    $region47: #{_net_forward_impl.1} parent=1 // pred_check_branch
      %192 = sbr.rel (0) target = $region49
    $region48: #{_net_forward_impl.1} parent=1 // pred_region
      %194 = vsyncadd [#allocation4], 0
      %s196 = sshll.u32 [#allocation10], 4
      %s197 = int_to_ptr.vmem [resolvable:$true] %s196
      %s198 = sshll.u32 %s7, 4
      %s199 = int_to_ptr.hbm [resolvable:$true] %s198
      %201 = dma.vmem_to_hbm [thread:$0]  %s197, 128, %s199, [#allocation4]
    $region49: #{_net_forward_impl.1} parent=1 // pred_fallthru
      _
    // Predicated region
    $region50: #{_net_forward_impl.1} parent=1 // pred_check
      _
    $region51: #{_net_forward_impl.1} parent=1 // pred_check_branch
      %203 = sbr.rel (0) target = $region53
    $region52: #{_net_forward_impl.1} parent=1 // pred_region
      %205 = dma.done [#allocation4], 128
    $region53: #{_net_forward_impl.1} parent=1 // pred_fallthru
      _
    %206 = vsyncpa [#allocation3], 1
    %207 = vsyncpa [#allocation6], 1
    %208 = vsyncpa [#allocation9], 1
    %209 = vsyncpa [#allocation4], 1

</llo_original>
